<compile_context>
chip_gen: v7x
topology: tpu7x:2x2x1
jax: 0.10.0
libtpu: 0.0.40
codegen_flags: <defaults>
</compile_context>

<pallas_src>
import functools
import math

import jax
import jax.numpy as jnp
from jax import lax
from jax.experimental import pallas as pl
from jax.experimental.pallas import tpu as pltpu


_LANE = 128          # vreg lane width / MXU column width
_ROW_ALIGN = 16      # bf16 sublane packing: keep row tiles a multiple of 16
_LN_EPS = 1e-5


def _round_up(v: int, m: int) -> int:
    return (v + m - 1) // m * m


def _pad2(a, rows, cols, dtype):
    return jnp.zeros((rows, cols), dtype).at[:a.shape[0], :a.shape[1]].set(
        a.astype(dtype))


def _pad_bias(b, cols):
    b = jnp.asarray(b).reshape(-1)
    return jnp.zeros((1, cols), jnp.float32).at[0, :b.shape[0]].set(
        b.astype(jnp.float32))


def _vmem_limit(resident_bytes, per_step_bytes):
    est = 2 * int(resident_bytes) + 2 * int(per_step_bytes) + (4 << 20)
    return int(min(max(est, 16 << 20), 64 << 20))


def _row_tiling(M, tm_max):
    tm = min(int(tm_max), _round_up(max(M, 1), _ROW_ALIGN))
    tm = _round_up(tm, _ROW_ALIGN)
    m_pad = _round_up(M, tm)
    return tm, m_pad, m_pad // tm


def _layernorm_padded(x_f32, gamma_ref, beta_ref, c_real):
    """LayerNorm over the real feature count; padded lanes of x are zero, and
    gamma/beta are zero-padded, so padded output lanes are exactly zero."""
    inv_c = 1.0 / float(c_real)
    mean = jnp.sum(x_f32, axis=-1, keepdims=True) * inv_c
    mean_sq = jnp.sum(x_f32 * x_f32, axis=-1, keepdims=True) * inv_c
    var = mean_sq - mean * mean
    xn = (x_f32 - mean) * lax.rsqrt(var + _LN_EPS)
    return xn * gamma_ref[...] + beta_ref[...]


# ==========================================================================
# Kernel 1: fused prediction head (decoder_norm + class_embed + mask_embed)
# ==========================================================================
def _pred_head_kernel(x_ref, g_ref, be_ref, wc_ref, bc_ref,
                      w0_ref, b0_ref, w1_ref, b1_ref, w2_ref, b2_ref,
                      cls_ref, me_ref, *, c_real, compute_dtype):
    x = x_ref[...].astype(jnp.float32)
    xn = _layernorm_padded(x, g_ref, be_ref, c_real)
    xb = xn.astype(compute_dtype)

    # class head
    cls = jnp.dot(xb, wc_ref[...], preferred_element_type=jnp.float32)
    cls_ref[...] = (cls + bc_ref[...]).astype(cls_ref.dtype)

    # mask_embed = MLP(hidden, hidden, mask_dim, 3): ReLU between first 2 layers
    h = jnp.dot(xb, w0_ref[...], preferred_element_type=jnp.float32) + b0_ref[...]
    h = jnp.maximum(h, 0.0).astype(compute_dtype)
    h = jnp.dot(h, w1_ref[...], preferred_element_type=jnp.float32) + b1_ref[...]
    h = jnp.maximum(h, 0.0).astype(compute_dtype)
    m = jnp.dot(h, w2_ref[...], preferred_element_type=jnp.float32) + b2_ref[...]
    me_ref[...] = m.astype(me_ref.dtype)


def prediction_head_forward(output_qbc, ln_gamma, ln_beta, class_params,
                            mask_mlp_params, *, compute_dtype=jnp.bfloat16,
                            tm_max=256):
    """output_qbc: (Q, B, C) as in the module.  Returns
    (outputs_class (B, Q, num_classes) f32, mask_embed (B, Q, mask_dim) f32)."""
    Q, B, C = output_qbc.shape
    wc, bc = class_params
    num_classes = wc.shape[1]
    assert len(mask_mlp_params) == 3
    mask_dim = mask_mlp_params[-1][0].shape[1]

    x2d = jnp.transpose(output_qbc, (1, 0, 2)).reshape(B * Q, C)
    M = B * Q
    Cp = _round_up(C, _LANE)
    NClsP = _round_up(num_classes, _LANE)
    MdP = _round_up(mask_dim, _LANE)
    tm, m_pad, grid_m = _row_tiling(M, tm_max)

    x_p = jnp.zeros((m_pad, Cp), jnp.float32).at[:M, :C].set(
        x2d.astype(jnp.float32))
    g_p = _pad_bias(ln_gamma, Cp)
    be_p = _pad_bias(ln_beta, Cp)
    wc_p = _pad2(wc, Cp, NClsP, compute_dtype)
    bc_p = _pad_bias(bc, NClsP)

    w_ps, b_ps = [], []
    for (w, b) in mask_mlp_params:
        k, n = w.shape
        kp, np_ = _round_up(k, _LANE), _round_up(n, _LANE)
        w_ps.append(_pad2(w, kp, np_, compute_dtype))
        b_ps.append(_pad_bias(b, np_))

    inputs = [x_p, g_p, be_p, wc_p, bc_p,
              w_ps[0], b_ps[0], w_ps[1], b_ps[1], w_ps[2], b_ps[2]]
    in_specs = [pl.BlockSpec((tm, Cp), lambda i: (i, 0))]
    for t in inputs[1:]:
        in_specs.append(pl.BlockSpec(t.shape, lambda i: (0, 0)))  # resident

    resident = sum(int(t.size) * t.dtype.itemsize for t in inputs[1:])
    per_step = 4 * tm * (Cp + NClsP + MdP) + 3 * 4 * tm * max(Cp, NClsP, MdP)

    kernel = functools.partial(_pred_head_kernel, c_real=C,
                               compute_dtype=compute_dtype)
    cls_p, me_p = pl.pallas_call(
        kernel,
        out_shape=(jax.ShapeDtypeStruct((m_pad, NClsP), jnp.float32),
                   jax.ShapeDtypeStruct((m_pad, MdP), jnp.float32)),
        grid=(grid_m,),
        in_specs=in_specs,
        out_specs=(pl.BlockSpec((tm, NClsP), lambda i: (i, 0)),
                   pl.BlockSpec((tm, MdP), lambda i: (i, 0))),
        compiler_params=pltpu.CompilerParams(
            dimension_semantics=("parallel",),
            vmem_limit_bytes=_vmem_limit(resident, per_step)),
    )(*inputs)

    outputs_class = cls_p[:M, :num_classes].reshape(B, Q, num_classes)
    mask_embed = me_p[:M, :mask_dim].reshape(B, Q, mask_dim)
    return outputs_class, mask_embed


# ==========================================================================
# Kernel 2: outputs_mask = einsum('bqc,bchw->bqhw', mask_embed, mask_features)
# ==========================================================================
def _mask_einsum_kernel(me_ref, mf_ref, o_ref):
    o_ref[...] = jnp.dot(me_ref[...], mf_ref[...],
                         preferred_element_type=jnp.float32).astype(o_ref.dtype)


def mask_einsum_forward(mask_embed, mask_features, *,
                        compute_dtype=jnp.bfloat16, tn_max=512):
    """mask_embed: (B, Q, C); mask_features: (B, C, H, W) -> (B, Q, H, W)."""
    B, Q, C = mask_embed.shape
    Bf, Cf, H, W = mask_features.shape
    assert B == Bf and C == Cf
    HW = H * W

    Cp = _round_up(C, _LANE)
    Qp = _round_up(Q, 8)
    tn = _round_up(min(int(tn_max), _round_up(HW, _LANE)), _LANE)
    hw_pad = _round_up(HW, tn)
    grid_n = hw_pad // tn

    me_p = jnp.zeros((B, Qp, Cp), compute_dtype).at[:, :Q, :C].set(
        mask_embed.astype(compute_dtype))
    mf_p = jnp.zeros((B, Cp, hw_pad), compute_dtype).at[:, :C, :HW].set(
        mask_features.reshape(B, C, HW).astype(compute_dtype))

    per_step = 2 * (Qp * Cp + Cp * tn) + 4 * Qp * tn
    out_p = pl.pallas_call(
        _mask_einsum_kernel,
        out_shape=jax.ShapeDtypeStruct((B, Qp, hw_pad), jnp.float32),
        grid=(B, grid_n),
        in_specs=[pl.BlockSpec((None, Qp, Cp), lambda b, j: (b, 0, 0)),
                  pl.BlockSpec((None, Cp, tn), lambda b, j: (b, 0, j))],
        out_specs=pl.BlockSpec((None, Qp, tn), lambda b, j: (b, 0, j)),
        compiler_params=pltpu.CompilerParams(
            dimension_semantics=("parallel", "parallel"),
            vmem_limit_bytes=_vmem_limit(0, per_step)),
    )(me_p, mf_p)

    return out_p[:, :Q, :HW].reshape(B, Q, H, W)


# ==========================================================================
# Kernel 3: FFNLayer.forward_post — Linear->ReLU->Linear->residual->LayerNorm
# ==========================================================================
def _ffn_layer_kernel(x_ref, w1_ref, b1_ref, w2_ref, b2_ref, g_ref, be_ref,
                      o_ref, *, c_real, compute_dtype):
    x = x_ref[...].astype(jnp.float32)
    h = jnp.dot(x.astype(compute_dtype), w1_ref[...],
                preferred_element_type=jnp.float32) + b1_ref[...]
    h = jnp.maximum(h, 0.0).astype(compute_dtype)
    y = jnp.dot(h, w2_ref[...], preferred_element_type=jnp.float32) + b2_ref[...]
    r = x + y                                      # residual in f32
    o_ref[...] = _layernorm_padded(r, g_ref, be_ref, c_real).astype(o_ref.dtype)


def ffn_layer_forward(x, w1, b1, w2, b2, gamma, beta, *,
                      compute_dtype=jnp.bfloat16, tm_max=256):
    """x: (..., d_model). dropout=0.0 as configured in the decoder."""
    lead = x.shape[:-1]
    C = x.shape[-1]
    FF = w1.shape[1]
    x2d = x.reshape(-1, C)
    M = x2d.shape[0]
    Cp = _round_up(C, _LANE)
    Fp = _round_up(FF, _LANE)
    tm, m_pad, grid_m = _row_tiling(M, tm_max)

    x_p = jnp.zeros((m_pad, Cp), jnp.float32).at[:M, :C].set(
        x2d.astype(jnp.float32))
    w1_p = _pad2(w1, Cp, Fp, compute_dtype)
    b1_p = _pad_bias(b1, Fp)
    w2_p = _pad2(w2, Fp, Cp, compute_dtype)
    b2_p = _pad_bias(b2, Cp)
    g_p = _pad_bias(gamma, Cp)
    be_p = _pad_bias(beta, Cp)

    inputs = [x_p, w1_p, b1_p, w2_p, b2_p, g_p, be_p]
    in_specs = [pl.BlockSpec((tm, Cp), lambda i: (i, 0))]
    for t in inputs[1:]:
        in_specs.append(pl.BlockSpec(t.shape, lambda i: (0, 0)))

    resident = sum(int(t.size) * t.dtype.itemsize for t in inputs[1:])
    per_step = 4 * tm * Cp * 2 + 4 * tm * max(Cp, Fp) * 3

    kernel = functools.partial(_ffn_layer_kernel, c_real=C,
                               compute_dtype=compute_dtype)
    out_p = pl.pallas_call(
        kernel,
        out_shape=jax.ShapeDtypeStruct((m_pad, Cp), jnp.float32),
        grid=(grid_m,),
        in_specs=in_specs,
        out_specs=pl.BlockSpec((tm, Cp), lambda i: (i, 0)),
        compiler_params=pltpu.CompilerParams(
            dimension_semantics=("parallel",),
            vmem_limit_bytes=_vmem_limit(resident, per_step)),
    )(*inputs)

    return out_p[:M, :C].reshape(*lead, C)


# ==========================================================================
# Kernel 4: generic fused MLP (ref_point_head / query_scale heads)
# refs = (x_ref, w_0, b_0, ..., w_{L-1}, b_{L-1}, o_ref)
# ==========================================================================
def _fused_mlp_kernel(*refs, num_layers: int, compute_dtype):
    x_ref = refs[0]
    o_ref = refs[-1]
    wb_refs = refs[1:-1]

    y = x_ref[...].astype(compute_dtype)
    for i in range(num_layers):
        w_ref = wb_refs[2 * i]
        b_ref = wb_refs[2 * i + 1]
        acc = jnp.dot(y, w_ref[...], preferred_element_type=jnp.float32)
        acc = acc + b_ref[...]
        if i < num_layers - 1:
            y = jnp.maximum(acc, 0.0).astype(compute_dtype)
        else:
            y = acc
    o_ref[...] = y.astype(o_ref.dtype)


def mlp_forward(x, params, *, compute_dtype=jnp.bfloat16, tm_max=256):
    """x: (..., input_dim); params: list of (w (in,out), b (1,out))."""
    lead_shape = x.shape[:-1]
    in_dim = x.shape[-1]
    num_layers = len(params)
    assert params[0][0].shape[0] == in_dim

    x2d = x.reshape(-1, in_dim)
    M = x2d.shape[0]
    out_dim = params[-1][0].shape[1]

    padded_ws, padded_bs = [], []
    for (w, b) in params:
        k, n = w.shape
        kp, np_ = _round_up(k, _LANE), _round_up(n, _LANE)
        padded_ws.append(_pad2(w, kp, np_, compute_dtype))
        padded_bs.append(_pad_bias(b, np_))
    kp0 = padded_ws[0].shape[0]
    np_last = padded_ws[-1].shape[1]

    tm, m_pad, grid_m = _row_tiling(M, tm_max)
    x_p = jnp.zeros((m_pad, kp0), compute_dtype).at[:M, :in_dim].set(
        x2d.astype(compute_dtype))

    inputs = [x_p]
    in_specs = [pl.BlockSpec((tm, kp0), lambda i: (i, 0))]
    for wp, bp in zip(padded_ws, padded_bs):
        in_specs.append(pl.BlockSpec(wp.shape, lambda i: (0, 0)))
        in_specs.append(pl.BlockSpec(bp.shape, lambda i: (0, 0)))
        inputs.append(wp)
        inputs.append(bp)

    resident = sum(int(t.size) * t.dtype.itemsize for t in inputs[1:])
    max_feat = max(kp0, np_last, *(w.shape[1] for w in padded_ws))
    per_step = 2 * tm * kp0 + 4 * tm * np_last + 4 * tm * max_feat * 3

    kernel = functools.partial(_fused_mlp_kernel, num_layers=num_layers,
                               compute_dtype=compute_dtype)
    out_p = pl.pallas_call(
        kernel,
        out_shape=jax.ShapeDtypeStruct((m_pad, np_last), jnp.float32),
        grid=(grid_m,),
        in_specs=in_specs,
        out_specs=pl.BlockSpec((tm, np_last), lambda i: (i, 0)),
        compiler_params=pltpu.CompilerParams(
            dimension_semantics=("parallel",),
            vmem_limit_bytes=_vmem_limit(resident, per_step)),
    )(*inputs)

    return out_p[:M, :out_dim].reshape(*lead_shape, out_dim)


# ==========================================================================
# Parameter init mimicking torch.nn.Linear default U(-1/sqrt(fan_in), ...)
# ==========================================================================
def init_mlp_params(key, input_dim, hidden_dim, output_dim, num_layers,
                    dtype=jnp.float32):
    h = [hidden_dim] * (num_layers - 1)
    dims_in = [input_dim] + h
    dims_out = h + [output_dim]
    params = []
    for n_in, n_out in zip(dims_in, dims_out):
        key, kw, kb = jax.random.split(key, 3)
        bound = 1.0 / math.sqrt(n_in)
        w = jax.random.uniform(kw, (n_in, n_out), dtype, -bound, bound)
        b = jax.random.uniform(kb, (1, n_out), dtype, -bound, bound)
        params.append((w, b))
    return params


# ==========================================================================
# Pure-JAX mixed-precision references (same bf16 matmul / f32 accumulate math)
# ==========================================================================
def _ln_ref(x, gamma, beta):
    mean = jnp.mean(x, -1, keepdims=True)
    var = jnp.mean((x - mean) ** 2, -1, keepdims=True)
    return (x - mean) / jnp.sqrt(var + _LN_EPS) * gamma + beta


def mlp_reference(x, params, compute_dtype=jnp.bfloat16):
    lead_shape = x.shape[:-1]
    y = x.reshape(-1, x.shape[-1]).astype(compute_dtype)
    num_layers = len(params)
    for i, (w, b) in enumerate(params):
        acc = jnp.dot(y, w.astype(compute_dtype),
                      preferred_element_type=jnp.float32) + b.reshape(-1)
        y = jnp.maximum(acc, 0.0).astype(compute_dtype) if i < num_layers - 1 else acc
    return y.reshape(*lead_shape, y.shape[-1])


def pred_head_reference(output_qbc, gamma, beta, class_params, mlp_params,
                        compute_dtype=jnp.bfloat16):
    x = jnp.transpose(output_qbc, (1, 0, 2)).astype(jnp.float32)
    xn = _ln_ref(x, gamma, beta)
    xb = xn.astype(compute_dtype)
    wc, bc = class_params
    cls = jnp.dot(xb, wc.astype(compute_dtype),
                  preferred_element_type=jnp.float32) + bc.reshape(-1)
    me = mlp_reference(xn, mlp_params, compute_dtype)
    return cls, me


def ffn_reference(x, w1, b1, w2, b2, gamma, beta, compute_dtype=jnp.bfloat16):
    xf = x.astype(jnp.float32)
    h = jnp.dot(xf.astype(compute_dtype), w1.astype(compute_dtype),
                preferred_element_type=jnp.float32) + b1.reshape(-1)
    h = jnp.maximum(h, 0.0).astype(compute_dtype)
    y = jnp.dot(h, w2.astype(compute_dtype),
                preferred_element_type=jnp.float32) + b2.reshape(-1)
    return _ln_ref(xf + y, gamma, beta)


def mask_einsum_reference(mask_embed, mask_features, compute_dtype=jnp.bfloat16):
    B, Q, C = mask_embed.shape
    _, _, H, W = mask_features.shape
    mf2 = mask_features.reshape(B, C, H * W).astype(compute_dtype)
    out = lax.dot_general(mask_embed.astype(compute_dtype), mf2,
                          dimension_numbers=(((2,), (1,)), ((0,), (0,))),
                          preferred_element_type=jnp.float32)
    return out.reshape(B, Q, H, W)


# ==========================================================================
if __name__ == "__main__":
    key = jax.random.PRNGKey(0)
    keys = jax.random.split(key, 16)

    # Small shapes consistent with the decoder.
    B, Q, C = 2, 8, 32             # batch, num_queries, hidden_dim
    num_classes, mask_dim = 5, 4
    H = W = 16
    dim_ff = 64

    # Decoder state in the module's native (num_queries, batch, hidden) layout.
    output_qbc = jax.random.normal(keys[0], (Q, B, C), jnp.float32)
    mask_features = jax.random.normal(keys[1], (B, mask_dim, H, W), jnp.float32)
    sine_embed = jax.random.normal(keys[2], (B, Q, 2 * C), jnp.float32)

    # decoder_norm
    ln_gamma = 1.0 + 0.1 * jax.random.normal(keys[3], (C,), jnp.float32)
    ln_beta = 0.1 * jax.random.normal(keys[4], (C,), jnp.float32)

    # class_embed = Linear(hidden_dim, num_classes)
    bound = 1.0 / math.sqrt(C)
    wc = jax.random.uniform(keys[5], (C, num_classes), jnp.float32, -bound, bound)
    bc = jax.random.uniform(keys[6], (1, num_classes), jnp.float32, -bound, bound)

    # mask_embed = MLP(hidden_dim, hidden_dim, mask_dim, 3)
    mask_mlp_params = init_mlp_params(keys[7], C, C, mask_dim, 3)
    # ref_point_head = MLP(hidden_dim*2, hidden_dim, hidden_dim, 2)
    ref_head_params = init_mlp_params(keys[8], 2 * C, C, C, 2)
    # query_scale = MLP(hidden_dim, hidden_dim, hidden_dim, 2)
    query_scale_params = init_mlp_params(keys[9], C, C, C, 2)

    # FFNLayer(d_model=hidden_dim, dim_feedforward=dim_ff)
    bnd1, bnd2 = 1.0 / math.sqrt(C), 1.0 / math.sqrt(dim_ff)
    ffn_w1 = jax.random.uniform(keys[10], (C, dim_ff), jnp.float32, -bnd1, bnd1)
    ffn_b1 = jax.random.uniform(keys[11], (1, dim_ff), jnp.float32, -bnd1, bnd1)
    ffn_w2 = jax.random.uniform(keys[12], (dim_ff, C), jnp.float32, -bnd2, bnd2)
    ffn_b2 = jax.random.uniform(keys[13], (1, C), jnp.float32, -bnd2, bnd2)
    ffn_g = 1.0 + 0.1 * jax.random.normal(keys[14], (C,), jnp.float32)
    ffn_be = 0.1 * jax.random.normal(keys[15], (C,), jnp.float32)

    atol = rtol = 2e-2

    # ---- 1. fused prediction head -------------------------------------
    cls_out, me_out = prediction_head_forward(
        output_qbc, ln_gamma, ln_beta, (wc, bc), mask_mlp_params)
    cls_out = jax.block_until_ready(cls_out)
    me_out = jax.block_until_ready(me_out)
    cls_ref, me_ref = pred_head_reference(
        output_qbc, ln_gamma, ln_beta, (wc, bc), mask_mlp_params)
    assert cls_out.shape == (B, Q, num_classes)
    assert me_out.shape == (B, Q, mask_dim)
    assert jnp.allclose(cls_out, cls_ref, atol=atol, rtol=rtol), "class head mismatch"
    assert jnp.allclose(me_out, me_ref, atol=atol, rtol=rtol), "mask_embed mismatch"

    # ---- 2. mask einsum -------------------------------------------------
    masks = jax.block_until_ready(mask_einsum_forward(me_out, mask_features))
    masks_ref = mask_einsum_reference(me_out, mask_features)
    assert masks.shape == (B, Q, H, W)
    assert jnp.allclose(masks, masks_ref, atol=atol, rtol=rtol), "mask einsum mismatch"

    # ---- 3. FFN layer ----------------------------------------------------
    ffn_in = jnp.transpose(output_qbc, (1, 0, 2))
    ffn_out = jax.block_until_ready(
        ffn_layer_forward(ffn_in, ffn_w1, ffn_b1, ffn_w2, ffn_b2, ffn_g, ffn_be))
    ffn_ref = ffn_reference(ffn_in, ffn_w1, ffn_b1, ffn_w2, ffn_b2, ffn_g, ffn_be)
    assert ffn_out.shape == (B, Q, C)
    assert jnp.allclose(ffn_out, ffn_ref, atol=atol, rtol=rtol), "FFN layer mismatch"

    # ---- 4. ref_point_head / query_scale via the generic MLP kernel ------
    raw_query_pos = jax.block_until_ready(mlp_forward(sine_embed, ref_head_params))
    assert raw_query_pos.shape == (B, Q, C)
    assert jnp.allclose(raw_query_pos, mlp_reference(sine_embed, ref_head_params),
                        atol=atol, rtol=rtol), "ref_point_head mismatch"

    pos_scale = jax.block_until_ready(mlp_forward(ffn_in, query_scale_params))
    assert pos_scale.shape == (B, Q, C)
    assert jnp.allclose(pos_scale, mlp_reference(ffn_in, query_scale_params),
                        atol=atol, rtol=rtol), "query_scale mismatch"

    # query_pos = pos_scale * raw_query_pos (trivial elementwise, done in JAX)
    _ = jax.block_until_ready(pos_scale * raw_query_pos)

    print("KERNEL_OK")
</pallas_src>

<mosaic_0001>
module attributes {stable_mosaic.version = 11 : i64} {
  func.func @_pred_head_kernel(%arg0: i32, %arg1: memref<16x128xf32, #tpu.memory_space<vmem>>, %arg2: memref<1x128xf32, #tpu.memory_space<vmem>>, %arg3: memref<1x128xf32, #tpu.memory_space<vmem>>, %arg4: memref<128x128xbf16, #tpu.memory_space<vmem>>, %arg5: memref<1x128xf32, #tpu.memory_space<vmem>>, %arg6: memref<128x128xbf16, #tpu.memory_space<vmem>>, %arg7: memref<1x128xf32, #tpu.memory_space<vmem>>, %arg8: memref<128x128xbf16, #tpu.memory_space<vmem>>, %arg9: memref<1x128xf32, #tpu.memory_space<vmem>>, %arg10: memref<128x128xbf16, #tpu.memory_space<vmem>>, %arg11: memref<1x128xf32, #tpu.memory_space<vmem>>, %arg12: memref<16x128xf32, #tpu.memory_space<vmem>>, %arg13: memref<16x128xf32, #tpu.memory_space<vmem>>) attributes {dimension_semantics = [#tpu.dimension_semantics<parallel>], iteration_bounds = array<i64: 1>, scalar_prefetch = 0 : i64, scratch_operands = 0 : i64, tpu.core_type = #tpu.core_type<tc>, window_params = [{transform_indices = @transform_0, window_bounds = array<i64: 16, 128>}, {pipeline_mode = #tpu.pipeline_mode<synchronous>, transform_indices = @transform_1, window_bounds = array<i64: 1, 128>}, {pipeline_mode = #tpu.pipeline_mode<synchronous>, transform_indices = @transform_2, window_bounds = array<i64: 1, 128>}, {pipeline_mode = #tpu.pipeline_mode<synchronous>, transform_indices = @transform_3, window_bounds = array<i64: 128, 128>}, {pipeline_mode = #tpu.pipeline_mode<synchronous>, transform_indices = @transform_4, window_bounds = array<i64: 1, 128>}, {pipeline_mode = #tpu.pipeline_mode<synchronous>, transform_indices = @transform_5, window_bounds = array<i64: 128, 128>}, {pipeline_mode = #tpu.pipeline_mode<synchronous>, transform_indices = @transform_6, window_bounds = array<i64: 1, 128>}, {pipeline_mode = #tpu.pipeline_mode<synchronous>, transform_indices = @transform_7, window_bounds = array<i64: 128, 128>}, {pipeline_mode = #tpu.pipeline_mode<synchronous>, transform_indices = @transform_8, window_bounds = array<i64: 1, 128>}, {pipeline_mode = #tpu.pipeline_mode<synchronous>, transform_indices = @transform_9, window_bounds = array<i64: 128, 128>}, {pipeline_mode = #tpu.pipeline_mode<synchronous>, transform_indices = @transform_10, window_bounds = array<i64: 1, 128>}, {transform_indices = @transform_11, window_bounds = array<i64: 16, 128>}, {transform_indices = @transform_12, window_bounds = array<i64: 16, 128>}]} {
    %c0 = arith.constant 0 : index
    %c0_0 = arith.constant 0 : index
    %0 = vector.load %arg1[%c0, %c0_0] : memref<16x128xf32, #tpu.memory_space<vmem>>, vector<16x128xf32>
    %cst = arith.constant dense<0.000000e+00> : vector<16xf32>
    %1 = vector.multi_reduction <add>, %0, %cst [1] : vector<16x128xf32> to vector<16xf32>
    %2 = vector.shape_cast %1 : vector<16xf32> to vector<16x1xf32>
    %cst_1 = arith.constant 3.125000e-02 : f32
    %3 = vector.broadcast %cst_1 : f32 to vector<16x1xf32>
    %4 = arith.mulf %2, %3 : vector<16x1xf32>
    %5 = arith.mulf %0, %0 : vector<16x128xf32>
    %cst_2 = arith.constant dense<0.000000e+00> : vector<16xf32>
    %6 = vector.multi_reduction <add>, %5, %cst_2 [1] : vector<16x128xf32> to vector<16xf32>
    %7 = vector.shape_cast %6 : vector<16xf32> to vector<16x1xf32>
    %cst_3 = arith.constant 3.125000e-02 : f32
    %8 = vector.broadcast %cst_3 : f32 to vector<16x1xf32>
    %9 = arith.mulf %7, %8 : vector<16x1xf32>
    %10 = arith.mulf %4, %4 : vector<16x1xf32>
    %11 = arith.subf %9, %10 : vector<16x1xf32>
    %12 = vector.broadcast %4 : vector<16x1xf32> to vector<16x128xf32>
    %13 = arith.subf %0, %12 : vector<16x128xf32>
    %cst_4 = arith.constant 9.99999974E-6 : f32
    %14 = vector.broadcast %cst_4 : f32 to vector<16x1xf32>
    %15 = arith.addf %11, %14 : vector<16x1xf32>
    %16 = math.rsqrt %15 : vector<16x1xf32>
    %17 = vector.broadcast %16 : vector<16x1xf32> to vector<16x128xf32>
    %18 = arith.mulf %13, %17 : vector<16x128xf32>
    %c0_5 = arith.constant 0 : index
    %c0_6 = arith.constant 0 : index
    %19 = vector.load %arg2[%c0_5, %c0_6] : memref<1x128xf32, #tpu.memory_space<vmem>>, vector<1x128xf32>
    %20 = vector.broadcast %19 : vector<1x128xf32> to vector<16x128xf32>
    %21 = arith.mulf %18, %20 : vector<16x128xf32>
    %c0_7 = arith.constant 0 : index
    %c0_8 = arith.constant 0 : index
    %22 = vector.load %arg3[%c0_7, %c0_8] : memref<1x128xf32, #tpu.memory_space<vmem>>, vector<1x128xf32>
    %23 = vector.broadcast %22 : vector<1x128xf32> to vector<16x128xf32>
    %24 = arith.addf %21, %23 : vector<16x128xf32>
    %25 = arith.truncf %24 : vector<16x128xf32> to vector<16x128xbf16>
    %c0_9 = arith.constant 0 : index
    %c0_10 = arith.constant 0 : index
    %26 = vector.load %arg4[%c0_9, %c0_10] : memref<128x128xbf16, #tpu.memory_space<vmem>>, vector<128x128xbf16>
    %cst_11 = arith.constant dense<0.000000e+00> : vector<16x128xf32>
    %27 = tpu.matmul %25, %26, %cst_11 {dimension_numbers = #tpu.dot_dimension_numbers<[1], [0], [0], [1], [0, 0, 1, 1], [], []>} : vector<16x128xbf16>, vector<128x128xbf16>, vector<16x128xf32> -> vector<16x128xf32>
    %c0_12 = arith.constant 0 : index
    %c0_13 = arith.constant 0 : index
    %28 = vector.load %arg5[%c0_12, %c0_13] : memref<1x128xf32, #tpu.memory_space<vmem>>, vector<1x128xf32>
    %29 = vector.broadcast %28 : vector<1x128xf32> to vector<16x128xf32>
    %30 = arith.addf %27, %29 : vector<16x128xf32>
    %c0_14 = arith.constant 0 : index
    %c0_15 = arith.constant 0 : index
    %31 = vector.load %arg12[%c0_14, %c0_15] : memref<16x128xf32, #tpu.memory_space<vmem>>, vector<16x128xf32>
    tpu.vector_store %arg12[%c0_14, %c0_15], %30 {strides = array<i32>} : memref<16x128xf32, #tpu.memory_space<vmem>>, vector<16x128xf32>,
    %c0_16 = arith.constant 0 : index
    %c0_17 = arith.constant 0 : index
    %32 = vector.load %arg6[%c0_16, %c0_17] : memref<128x128xbf16, #tpu.memory_space<vmem>>, vector<128x128xbf16>
    %cst_18 = arith.constant dense<0.000000e+00> : vector<16x128xf32>
    %33 = tpu.matmul %25, %32, %cst_18 {dimension_numbers = #tpu.dot_dimension_numbers<[1], [0], [0], [1], [0, 0, 1, 1], [], []>} : vector<16x128xbf16>, vector<128x128xbf16>, vector<16x128xf32> -> vector<16x128xf32>
    %c0_19 = arith.constant 0 : index
    %c0_20 = arith.constant 0 : index
    %34 = vector.load %arg7[%c0_19, %c0_20] : memref<1x128xf32, #tpu.memory_space<vmem>>, vector<1x128xf32>
    %35 = vector.broadcast %34 : vector<1x128xf32> to vector<16x128xf32>
    %36 = arith.addf %33, %35 : vector<16x128xf32>
    %cst_21 = arith.constant 0.000000e+00 : f32
    %37 = vector.broadcast %cst_21 : f32 to vector<16x128xf32>
    %38 = arith.maximumf %36, %37 : vector<16x128xf32>
    %39 = arith.truncf %38 : vector<16x128xf32> to vector<16x128xbf16>
    %c0_22 = arith.constant 0 : index
    %c0_23 = arith.constant 0 : index
    %40 = vector.load %arg8[%c0_22, %c0_23] : memref<128x128xbf16, #tpu.memory_space<vmem>>, vector<128x128xbf16>
    %cst_24 = arith.constant dense<0.000000e+00> : vector<16x128xf32>
    %41 = tpu.matmul %39, %40, %cst_24 {dimension_numbers = #tpu.dot_dimension_numbers<[1], [0], [0], [1], [0, 0, 1, 1], [], []>} : vector<16x128xbf16>, vector<128x128xbf16>, vector<16x128xf32> -> vector<16x128xf32>
    %c0_25 = arith.constant 0 : index
    %c0_26 = arith.constant 0 : index
    %42 = vector.load %arg9[%c0_25, %c0_26] : memref<1x128xf32, #tpu.memory_space<vmem>>, vector<1x128xf32>
    %43 = vector.broadcast %42 : vector<1x128xf32> to vector<16x128xf32>
    %44 = arith.addf %41, %43 : vector<16x128xf32>
    %cst_27 = arith.constant 0.000000e+00 : f32
    %45 = vector.broadcast %cst_27 : f32 to vector<16x128xf32>
    %46 = arith.maximumf %44, %45 : vector<16x128xf32>
    %47 = arith.truncf %46 : vector<16x128xf32> to vector<16x128xbf16>
    %c0_28 = arith.constant 0 : index
    %c0_29 = arith.constant 0 : index
    %48 = vector.load %arg10[%c0_28, %c0_29] : memref<128x128xbf16, #tpu.memory_space<vmem>>, vector<128x128xbf16>
    %cst_30 = arith.constant dense<0.000000e+00> : vector<16x128xf32>
    %49 = tpu.matmul %47, %48, %cst_30 {dimension_numbers = #tpu.dot_dimension_numbers<[1], [0], [0], [1], [0, 0, 1, 1], [], []>} : vector<16x128xbf16>, vector<128x128xbf16>, vector<16x128xf32> -> vector<16x128xf32>
    %c0_31 = arith.constant 0 : index
    %c0_32 = arith.constant 0 : index
    %50 = vector.load %arg11[%c0_31, %c0_32] : memref<1x128xf32, #tpu.memory_space<vmem>>, vector<1x128xf32>
    %51 = vector.broadcast %50 : vector<1x128xf32> to vector<16x128xf32>
    %52 = arith.addf %49, %51 : vector<16x128xf32>
    %c0_33 = arith.constant 0 : index
    %c0_34 = arith.constant 0 : index
    %53 = vector.load %arg13[%c0_33, %c0_34] : memref<16x128xf32, #tpu.memory_space<vmem>>, vector<16x128xf32>
    tpu.vector_store %arg13[%c0_33, %c0_34], %52 {strides = array<i32>} : memref<16x128xf32, #tpu.memory_space<vmem>>, vector<16x128xf32>,
    return
  }
  func.func @transform_0(%arg0: i32) -> (i32, i32) {
    %c0_i32 = arith.constant 0 : i32
    %c0_i32_0 = arith.constant 0 : i32
    return %arg0, %c0_i32 : i32, i32
  }
  func.func @transform_1(%arg0: i32) -> (i32, i32) {
    %c0_i32 = arith.constant 0 : i32
    %c0_i32_0 = arith.constant 0 : i32
    %c0_i32_1 = arith.constant 0 : i32
    return %c0_i32, %c0_i32_0 : i32, i32
  }
  func.func @transform_2(%arg0: i32) -> (i32, i32) {
    %c0_i32 = arith.constant 0 : i32
    %c0_i32_0 = arith.constant 0 : i32
    %c0_i32_1 = arith.constant 0 : i32
    return %c0_i32, %c0_i32_0 : i32, i32
  }
  func.func @transform_3(%arg0: i32) -> (i32, i32) {
    %c0_i32 = arith.constant 0 : i32
    %c0_i32_0 = arith.constant 0 : i32
    %c0_i32_1 = arith.constant 0 : i32
    return %c0_i32, %c0_i32_0 : i32, i32
  }
  func.func @transform_4(%arg0: i32) -> (i32, i32) {
    %c0_i32 = arith.constant 0 : i32
    %c0_i32_0 = arith.constant 0 : i32
    %c0_i32_1 = arith.constant 0 : i32
    return %c0_i32, %c0_i32_0 : i32, i32
  }
  func.func @transform_5(%arg0: i32) -> (i32, i32) {
    %c0_i32 = arith.constant 0 : i32
    %c0_i32_0 = arith.constant 0 : i32
    %c0_i32_1 = arith.constant 0 : i32
    return %c0_i32, %c0_i32_0 : i32, i32
  }
  func.func @transform_6(%arg0: i32) -> (i32, i32) {
    %c0_i32 = arith.constant 0 : i32
    %c0_i32_0 = arith.constant 0 : i32
    %c0_i32_1 = arith.constant 0 : i32
    return %c0_i32, %c0_i32_0 : i32, i32
  }
  func.func @transform_7(%arg0: i32) -> (i32, i32) {
    %c0_i32 = arith.constant 0 : i32
    %c0_i32_0 = arith.constant 0 : i32
    %c0_i32_1 = arith.constant 0 : i32
    return %c0_i32, %c0_i32_0 : i32, i32
  }
  func.func @transform_8(%arg0: i32) -> (i32, i32) {
    %c0_i32 = arith.constant 0 : i32
    %c0_i32_0 = arith.constant 0 : i32
    %c0_i32_1 = arith.constant 0 : i32
    return %c0_i32, %c0_i32_0 : i32, i32
  }
  func.func @transform_9(%arg0: i32) -> (i32, i32) {
    %c0_i32 = arith.constant 0 : i32
    %c0_i32_0 = arith.constant 0 : i32
    %c0_i32_1 = arith.constant 0 : i32
    return %c0_i32, %c0_i32_0 : i32, i32
  }
  func.func @transform_10(%arg0: i32) -> (i32, i32) {
    %c0_i32 = arith.constant 0 : i32
    %c0_i32_0 = arith.constant 0 : i32
    %c0_i32_1 = arith.constant 0 : i32
    return %c0_i32, %c0_i32_0 : i32, i32
  }
  func.func @transform_11(%arg0: i32) -> (i32, i32) {
    %c0_i32 = arith.constant 0 : i32
    %c0_i32_0 = arith.constant 0 : i32
    return %arg0, %c0_i32 : i32, i32
  }
  func.func @transform_12(%arg0: i32) -> (i32, i32) {
    %c0_i32 = arith.constant 0 : i32
    %c0_i32_0 = arith.constant 0 : i32
    return %arg0, %c0_i32 : i32, i32
  }
}

</mosaic_0001>

<llo_original>
// kernel: tpu_custom_call.1
$region0: #{tpu_custom_call.1}
  #allocation0 [shape = 'u32[]', space=smem, size = 0x4, offset = 0x4, fixed_abs, tag = 'smem constant byte address 0x4 - core index']
  #allocation1 [shape = 'u32[144,128]{1,0:T(1,128)}', space=vmem, size = 0x12000, scoped, tag = 'internal scratch']
  %s0 = inlined_call_operand.hbm [shape: f32[16,128], index: 0, kind: input, shape index: {}]
  %s1 = inlined_call_operand.vmem [shape: f32[1,128], index: 1, kind: input, shape index: {}]
  %s2 = inlined_call_operand.vmem [shape: f32[1,128], index: 2, kind: input, shape index: {}]
  %s3 = inlined_call_operand.hbm [shape: bf16[128,128], index: 3, kind: input, shape index: {}]
  %s4 = inlined_call_operand.vmem [shape: f32[1,128], index: 4, kind: input, shape index: {}]
  %s5 = inlined_call_operand.hbm [shape: bf16[128,128], index: 5, kind: input, shape index: {}]
  %s6 = inlined_call_operand.vmem [shape: f32[1,128], index: 6, kind: input, shape index: {}]
  %s7 = inlined_call_operand.hbm [shape: bf16[128,128], index: 7, kind: input, shape index: {}]
  %s8 = inlined_call_operand.vmem [shape: f32[1,128], index: 8, kind: input, shape index: {}]
  %s9 = inlined_call_operand.hbm [shape: bf16[128,128], index: 9, kind: input, shape index: {}]
  %s10 = inlined_call_operand.vmem [shape: f32[1,128], index: 10, kind: input, shape index: {}]
  %s11 = inlined_call_operand.hbm [shape: f32[16,128], index: 11, kind: output, shape index: {0}]
  %s12 = inlined_call_operand.hbm [shape: f32[16,128], index: 12, kind: output, shape index: {1}]
  %13 = xla_tuple %s11, %s12
  %s14 = sld [smem:[#allocation0]]
  $region82: #{tpu_custom_call.1} parent=0
    _
  %s16 = ssub.s32 1, %s14
  %s17 = scalar_select 0, %s16, %s14
  $region1: #{tpu_custom_call.1} parent=0
    #allocation2 [shape = 'u8[8192]{0}', space=vmem, size = 0x2000, scoped, tag = 'input window, operand 0, single buffered']
    #allocation3 [shape = 's32[1]{0}', space=sflag, size = 0x4, scoped, tag = 'scoped memory for tpu_custom_call.1']
    #allocation4 [shape = 's32[1]{0}', space=sflag, size = 0x4, scoped, tag = 'scoped memory for tpu_custom_call.1']
    #allocation5 [shape = 'u8[32768]{0}', space=vmem, size = 0x8000, scoped, tag = 'input window, operand 3, single buffered']
    #allocation6 [shape = 's32[1]{0}', space=sflag, size = 0x4, scoped, tag = 'scoped memory for tpu_custom_call.1']
    #allocation7 [shape = 'u8[32768]{0}', space=vmem, size = 0x8000, scoped, tag = 'input window, operand 5, single buffered']
    #allocation8 [shape = 'u8[32768]{0}', space=vmem, size = 0x8000, scoped, tag = 'input window, operand 7, single buffered']
    #allocation9 [shape = 's32[1]{0}', space=sflag, size = 0x4, scoped, tag = 'scoped memory for tpu_custom_call.1']
    #allocation10 [shape = 'u8[32768]{0}', space=vmem, size = 0x8000, scoped, tag = 'input window, operand 9, single buffered']
    #allocation11 [shape = 'u8[8192]{0}', space=vmem, size = 0x2000, scoped, tag = 'output window, operand 0, single buffered']
    #allocation12 [shape = 'u8[8192]{0}', space=vmem, size = 0x2000, scoped, tag = 'output window, operand 1, single buffered']
    #allocation13 [shape = 's32[1]{0}', space=sflag, size = 0x4, scoped, tag = 'scoped memory for tpu_custom_call.1']
    %18 = vsyncpa [#allocation3], 0
    %19 = vsyncpa [#allocation6], 0
    %20 = vsyncpa [#allocation9], 0
    %21 = vsyncpa [#allocation4], 0
    %22 = vsyncpa [#allocation13], 0
    // Predicated region
    $region2: #{tpu_custom_call.1} parent=1 // pred_check
      _
    $region3: #{tpu_custom_call.1} parent=1 // pred_check_branch
      %24 = sbr.rel (0) target = $region5
    $region4: #{tpu_custom_call.1} parent=1 // pred_region
      %s26 = ssub.s32 256, 256
      %27 = vsyncadd [#allocation3], %s26
      %s28 = sshll.u32 [#allocation2], 4
      %s29 = int_to_ptr.vmem [resolvable:$true] %s28
      %34 = dma.hbm_to_vmem [thread:$0]  %s0, 256, %s29, [#allocation3], 128, 128, 8
    $region5: #{tpu_custom_call.1} parent=1 // pred_fallthru
      _
    // Predicated region
    $region6: #{tpu_custom_call.1} parent=1 // pred_check
      _
    $region7: #{tpu_custom_call.1} parent=1 // pred_check_branch
      %36 = sbr.rel (0) target = $region9
    $region8: #{tpu_custom_call.1} parent=1 // pred_region
      _
    $region9: #{tpu_custom_call.1} parent=1 // pred_fallthru
      _
    // Predicated region
    $region10: #{tpu_custom_call.1} parent=1 // pred_check
      _
    $region11: #{tpu_custom_call.1} parent=1 // pred_check_branch
      %38 = sbr.rel (0) target = $region13
    $region12: #{tpu_custom_call.1} parent=1 // pred_region
      _
    $region13: #{tpu_custom_call.1} parent=1 // pred_fallthru
      _
    // Predicated region
    $region14: #{tpu_custom_call.1} parent=1 // pred_check
      _
    $region15: #{tpu_custom_call.1} parent=1 // pred_check_branch
      %40 = sbr.rel (0) target = $region17
    $region16: #{tpu_custom_call.1} parent=1 // pred_region
      %s42 = ssub.s32 1024, 1024
      %43 = vsyncadd [#allocation6], %s42
      %s44 = sshll.u32 [#allocation5], 4
      %s45 = int_to_ptr.vmem [resolvable:$true] %s44
      %50 = dma.hbm_to_vmem [thread:$0]  %s3, 1024, %s45, [#allocation6], 64, 64, 4
    $region17: #{tpu_custom_call.1} parent=1 // pred_fallthru
      _
    // Predicated region
    $region18: #{tpu_custom_call.1} parent=1 // pred_check
      _
    $region19: #{tpu_custom_call.1} parent=1 // pred_check_branch
      %52 = sbr.rel (0) target = $region21
    $region20: #{tpu_custom_call.1} parent=1 // pred_region
      _
    $region21: #{tpu_custom_call.1} parent=1 // pred_fallthru
      _
    // Predicated region
    $region22: #{tpu_custom_call.1} parent=1 // pred_check
      _
    $region23: #{tpu_custom_call.1} parent=1 // pred_check_branch
      %54 = sbr.rel (0) target = $region25
    $region24: #{tpu_custom_call.1} parent=1 // pred_region
      %s56 = ssub.s32 1024, 1024
      %57 = vsyncadd [#allocation6], %s56
      %s58 = sshll.u32 [#allocation7], 4
      %s59 = int_to_ptr.vmem [resolvable:$true] %s58
      %64 = dma.hbm_to_vmem [thread:$0]  %s5, 1024, %s59, [#allocation6], 64, 64, 4
    $region25: #{tpu_custom_call.1} parent=1 // pred_fallthru
      _
    // Predicated region
    $region26: #{tpu_custom_call.1} parent=1 // pred_check
      _
    $region27: #{tpu_custom_call.1} parent=1 // pred_check_branch
      %66 = sbr.rel (0) target = $region29
    $region28: #{tpu_custom_call.1} parent=1 // pred_region
      _
    $region29: #{tpu_custom_call.1} parent=1 // pred_fallthru
      _
    // Predicated region
    $region30: #{tpu_custom_call.1} parent=1 // pred_check
      _
    $region31: #{tpu_custom_call.1} parent=1 // pred_check_branch
      %68 = sbr.rel (0) target = $region33
    $region32: #{tpu_custom_call.1} parent=1 // pred_region
      %s70 = ssub.s32 1024, 1024
      %71 = vsyncadd [#allocation9], %s70
      %s72 = sshll.u32 [#allocation8], 4
      %s73 = int_to_ptr.vmem [resolvable:$true] %s72
      %78 = dma.hbm_to_vmem [thread:$0]  %s7, 1024, %s73, [#allocation9], 64, 64, 4
    $region33: #{tpu_custom_call.1} parent=1 // pred_fallthru
      _
    // Predicated region
    $region34: #{tpu_custom_call.1} parent=1 // pred_check
      _
    $region35: #{tpu_custom_call.1} parent=1 // pred_check_branch
      %80 = sbr.rel (0) target = $region37
    $region36: #{tpu_custom_call.1} parent=1 // pred_region
      _
    $region37: #{tpu_custom_call.1} parent=1 // pred_fallthru
      _
    // Predicated region
    $region38: #{tpu_custom_call.1} parent=1 // pred_check
      _
    $region39: #{tpu_custom_call.1} parent=1 // pred_check_branch
      %82 = sbr.rel (0) target = $region41
    $region40: #{tpu_custom_call.1} parent=1 // pred_region
      %s84 = ssub.s32 1024, 1024
      %85 = vsyncadd [#allocation9], %s84
      %s86 = sshll.u32 [#allocation10], 4
      %s87 = int_to_ptr.vmem [resolvable:$true] %s86
      %92 = dma.hbm_to_vmem [thread:$0]  %s9, 1024, %s87, [#allocation9], 64, 64, 4
    $region41: #{tpu_custom_call.1} parent=1 // pred_fallthru
      _
    // Predicated region
    $region42: #{tpu_custom_call.1} parent=1 // pred_check
      _
    $region43: #{tpu_custom_call.1} parent=1 // pred_check_branch
      %94 = sbr.rel (0) target = $region45
    $region44: #{tpu_custom_call.1} parent=1 // pred_region
      _
    $region45: #{tpu_custom_call.1} parent=1 // pred_fallthru
      _
    // Predicated region
    $region46: #{tpu_custom_call.1} parent=1 // pred_check
      _
    $region47: #{tpu_custom_call.1} parent=1 // pred_check_branch
      %96 = sbr.rel (0) target = $region49
    $region48: #{tpu_custom_call.1} parent=1 // pred_region
      %97 = dma.done [#allocation3], 256
    $region49: #{tpu_custom_call.1} parent=1 // pred_fallthru
      _
    // Predicated region
    $region50: #{tpu_custom_call.1} parent=1 // pred_check
      _
    $region51: #{tpu_custom_call.1} parent=1 // pred_check_branch
      %99 = sbr.rel (0) target = $region53
    $region52: #{tpu_custom_call.1} parent=1 // pred_region
      %100 = dma.done [#allocation6], 1024
    $region53: #{tpu_custom_call.1} parent=1 // pred_fallthru
      _
    // Predicated region
    $region54: #{tpu_custom_call.1} parent=1 // pred_check
      _
    $region55: #{tpu_custom_call.1} parent=1 // pred_check_branch
      %102 = sbr.rel (0) target = $region57
    $region56: #{tpu_custom_call.1} parent=1 // pred_region
      %103 = dma.done [#allocation6], 1024
    $region57: #{tpu_custom_call.1} parent=1 // pred_fallthru
      _
    // Predicated region
    $region58: #{tpu_custom_call.1} parent=1 // pred_check
      _
    $region59: #{tpu_custom_call.1} parent=1 // pred_check_branch
      %105 = sbr.rel (0) target = $region61
    $region60: #{tpu_custom_call.1} parent=1 // pred_region
      %106 = dma.done [#allocation9], 1024
    $region61: #{tpu_custom_call.1} parent=1 // pred_fallthru
      _
    // Predicated region
    $region62: #{tpu_custom_call.1} parent=1 // pred_check
      _
    $region63: #{tpu_custom_call.1} parent=1 // pred_check_branch
      %108 = sbr.rel (0) target = $region65
    $region64: #{tpu_custom_call.1} parent=1 // pred_region
      %109 = dma.done [#allocation9], 1024
    $region65: #{tpu_custom_call.1} parent=1 // pred_fallthru
      _
    %v111 = vld [vmem:[#allocation2] sm:$0xff]
    %v112 = vld [vmem:[#allocation2 + $0x8] sm:$0xff]
    %113 = vadd.xlane.f32.xlu0 %v111
    %v114 = vpop.xlane.xlu0 %113
    %115 = vadd.xlane.f32.xlu0 %v112
    %v116 = vpop.xlane.xlu0 %115
    %v117 = vmul.f32 %v114, 0.03125
    %v118 = vmul.f32 %v116, 0.03125
    %v119 = vmul.f32 %v111, %v111
    %v120 = vmul.f32 %v112, %v112
    %121 = vadd.xlane.f32.xlu0 %v119
    %v122 = vpop.xlane.xlu0 %121
    %123 = vadd.xlane.f32.xlu0 %v120
    %v124 = vpop.xlane.xlu0 %123
    %v125 = vmul.f32 %v122, 0.03125
    %v126 = vmul.f32 %v124, 0.03125
    %v127 = vmul.f32 %v117, %v117
    %v128 = vmul.f32 %v118, %v118
    %v129 = vsub.f32 %v125, %v127
    %v130 = vsub.f32 %v126, %v128
    %v131 = vsub.f32 %v111, %v117
    %v132 = vsub.f32 %v112, %v118
    %v133 = vadd.f32 %v129, 1e-05
    %v134 = vadd.f32 %v130, 1e-05
    %v135 = vrsqrt.pop %v133
    %v136 = vrsqrt.pop %v134
    %v137 = vmul.f32 %v131, %v135
    %v138 = vmul.f32 %v132, %v136
    %v139 = vld [vmem:[%s1] sm:$0x1]
    %v141 = vlaneseq
    %v142 = vshrl.u32 %v141, 7
    %v143 = vsub.s32 0, %v142
    %v144 = vrot.slane %v139, %v143
    %v146 = vmul.f32 %v137, %v144
    %v147 = vmul.f32 %v138, %v144
    %v148 = vld [vmem:[%s2] sm:$0x1]
    %v150 = vlaneseq
    %v151 = vshrl.u32 %v150, 7
    %v152 = vsub.s32 0, %v151
    %v153 = vrot.slane %v148, %v152
    %v155 = vadd.f32 %v146, %v153
    %v156 = vadd.f32 %v147, %v153
    %v157 = vpack.c.bf16 %v156, %v155
    %v158 = vld [vmem:[#allocation5] sm:$0xf]
    %v159 = vld [vmem:[#allocation5 + $0x4] sm:$0xf]
    %v160 = vld [vmem:[#allocation5 + $0x8] sm:$0xf]
    %v161 = vld [vmem:[#allocation5 + $0xc] sm:$0xf]
    %v162 = vld [vmem:[#allocation5 + $0x10] sm:$0xf]
    %v163 = vld [vmem:[#allocation5 + $0x14] sm:$0xf]
    %v164 = vld [vmem:[#allocation5 + $0x18] sm:$0xf]
    %v165 = vld [vmem:[#allocation5 + $0x1c] sm:$0xf]
    %v166 = vld [vmem:[#allocation5 + $0x20] sm:$0xf]
    %v167 = vld [vmem:[#allocation5 + $0x24] sm:$0xf]
    %v168 = vld [vmem:[#allocation5 + $0x28] sm:$0xf]
    %v169 = vld [vmem:[#allocation5 + $0x2c] sm:$0xf]
    %v170 = vld [vmem:[#allocation5 + $0x30] sm:$0xf]
    %v171 = vld [vmem:[#allocation5 + $0x34] sm:$0xf]
    %v172 = vld [vmem:[#allocation5 + $0x38] sm:$0xf]
    %v173 = vld [vmem:[#allocation5 + $0x3c] sm:$0xf]
    %v174 = vld [vmem:[%s4] sm:$0x1]
    %v176 = vlaneseq
    %v177 = vshrl.u32 %v176, 7
    %v178 = vsub.s32 0, %v177
    %v179 = vrot.slane %v174, %v178
    %v197 = vunpack.c.l.b16 %v158
    %v198 = vunpack.c.l.b16 %v159
    %v199 = vunpack.c.l.b16 %v160
    %v200 = vunpack.c.l.b16 %v161
    %v201 = vunpack.c.l.b16 %v162
    %v202 = vunpack.c.l.b16 %v163
    %v203 = vunpack.c.l.b16 %v164
    %v204 = vunpack.c.l.b16 %v165
    %v205 = vunpack.c.l.b16 %v166
    %v206 = vunpack.c.l.b16 %v167
    %v207 = vunpack.c.l.b16 %v168
    %v208 = vunpack.c.l.b16 %v169
    %v209 = vunpack.c.l.b16 %v170
    %v210 = vunpack.c.l.b16 %v171
    %v211 = vunpack.c.l.b16 %v172
    %v212 = vunpack.c.l.b16 %v173
    %v213 = vpack.c.b16 %v198, %v197
    %v214 = vpack.c.b16 %v200, %v199
    %v215 = vpack.c.b16 %v202, %v201
    %v216 = vpack.c.b16 %v204, %v203
    %v217 = vpack.c.b16 %v206, %v205
    %v218 = vpack.c.b16 %v208, %v207
    %v219 = vpack.c.b16 %v210, %v209
    %v220 = vpack.c.b16 %v212, %v211
    %229 = vmatprep.subr.bf16.mxu0 0
    %230 = vmatpush1.bf16.msra.mxu0 %v213
    %231 = vmatprep.subr.bf16.mxu0 0
    %232 = vmatpush1.bf16.msra.mxu0 %v214
    %233 = vmatprep.subr.bf16.mxu0 0
    %234 = vmatpush1.bf16.msra.mxu0 %v215
    %235 = vmatprep.subr.bf16.mxu0 0
    %236 = vmatpush1.bf16.msra.mxu0 %v216
    %237 = vmatprep.subr.bf16.mxu0 0
    %238 = vmatpush1.bf16.msra.mxu0 %v217
    %239 = vmatprep.subr.bf16.mxu0 0
    %240 = vmatpush1.bf16.msra.mxu0 %v218
    %241 = vmatprep.subr.bf16.mxu0 0
    %242 = vmatpush1.bf16.msra.mxu0 %v219
    %243 = vmatprep.subr.bf16.mxu0 0
    %244 = vmatpush1.bf16.msra.mxu0 %v220
    %245 = vmatprep.subr.bf16.mxu0 0
    %246 = vmatpush1.bf16.msra.mxu0 0
    %247 = vmatprep.subr.bf16.mxu0 0
    %248 = vmatpush1.bf16.msra.mxu0 0
    %249 = vmatprep.subr.bf16.mxu0 0
    %250 = vmatpush1.bf16.msra.mxu0 0
    %251 = vmatprep.subr.bf16.mxu0 0
    %252 = vmatpush1.bf16.msra.mxu0 0
    %253 = vmatprep.subr.bf16.mxu0 0
    %254 = vmatpush1.bf16.msra.mxu0 0
    %255 = vmatprep.subr.bf16.mxu0 0
    %256 = vmatpush1.bf16.msra.mxu0 0
    %257 = vmatprep.subr.bf16.mxu0 0
    %258 = vmatpush1.bf16.msra.mxu0 0
    %259 = vmatprep.subr.bf16.mxu0 0
    %260 = vmatpush1.bf16.msra.mxu0 0
    %261 = vmatprep.mubr.bf16.mxu0 0
    %262 = vmatmul.mubr.bf16.gmra.mrb[0].mxu0 %v157
    %v263 = vpop.f32.mrb[0].mxu0
    %v264 = vadd.f32 %v179, %v263
    %v265 = vpop.f32.mrb[0].mxu0
    %v266 = vpop.f32.mrb[0].mxu0
    %v267 = vadd.f32 %v179, %v266
    %v268 = vpop.f32.mrb[0].mxu0
    %269 = vdwg.mxu0
    %270 = vst [vmem:[#allocation11] sm:$0xff] %v264
    %271 = vst [vmem:[#allocation11 + $0x8] sm:$0xff] %v267
    %v272 = vld [vmem:[#allocation7] sm:$0xf]
    %v273 = vld [vmem:[#allocation7 + $0x4] sm:$0xf]
    %v274 = vld [vmem:[#allocation7 + $0x8] sm:$0xf]
    %v275 = vld [vmem:[#allocation7 + $0xc] sm:$0xf]
    %v276 = vld [vmem:[#allocation7 + $0x10] sm:$0xf]
    %v277 = vld [vmem:[#allocation7 + $0x14] sm:$0xf]
    %v278 = vld [vmem:[#allocation7 + $0x18] sm:$0xf]
    %v279 = vld [vmem:[#allocation7 + $0x1c] sm:$0xf]
    %v280 = vld [vmem:[#allocation7 + $0x20] sm:$0xf]
    %v281 = vld [vmem:[#allocation7 + $0x24] sm:$0xf]
    %v282 = vld [vmem:[#allocation7 + $0x28] sm:$0xf]
    %v283 = vld [vmem:[#allocation7 + $0x2c] sm:$0xf]
    %v284 = vld [vmem:[#allocation7 + $0x30] sm:$0xf]
    %v285 = vld [vmem:[#allocation7 + $0x34] sm:$0xf]
    %v286 = vld [vmem:[#allocation7 + $0x38] sm:$0xf]
    %v287 = vld [vmem:[#allocation7 + $0x3c] sm:$0xf]
    %v288 = vld [vmem:[%s6] sm:$0x1]
    %v290 = vlaneseq
    %v291 = vshrl.u32 %v290, 7
    %v292 = vsub.s32 0, %v291
    %v293 = vrot.slane %v288, %v292
    %v311 = vunpack.c.l.b16 %v272
    %v312 = vunpack.c.l.b16 %v273
    %v313 = vunpack.c.l.b16 %v274
    %v314 = vunpack.c.l.b16 %v275
    %v315 = vunpack.c.l.b16 %v276
    %v316 = vunpack.c.l.b16 %v277
    %v317 = vunpack.c.l.b16 %v278
    %v318 = vunpack.c.l.b16 %v279
    %v319 = vunpack.c.l.b16 %v280
    %v320 = vunpack.c.l.b16 %v281
    %v321 = vunpack.c.l.b16 %v282
    %v322 = vunpack.c.l.b16 %v283
    %v323 = vunpack.c.l.b16 %v284
    %v324 = vunpack.c.l.b16 %v285
    %v325 = vunpack.c.l.b16 %v286
    %v326 = vunpack.c.l.b16 %v287
    %v327 = vpack.c.b16 %v312, %v311
    %v328 = vpack.c.b16 %v314, %v313
    %v329 = vpack.c.b16 %v316, %v315
    %v330 = vpack.c.b16 %v318, %v317
    %v331 = vpack.c.b16 %v320, %v319
    %v332 = vpack.c.b16 %v322, %v321
    %v333 = vpack.c.b16 %v324, %v323
    %v334 = vpack.c.b16 %v326, %v325
    %343 = vmatprep.subr.bf16.mxu0 0
    %344 = vmatpush1.bf16.msra.mxu0 %v327
    %345 = vmatprep.subr.bf16.mxu0 0
    %346 = vmatpush1.bf16.msra.mxu0 %v328
    %347 = vmatprep.subr.bf16.mxu0 0
    %348 = vmatpush1.bf16.msra.mxu0 %v329
    %349 = vmatprep.subr.bf16.mxu0 0
    %350 = vmatpush1.bf16.msra.mxu0 %v330
    %351 = vmatprep.subr.bf16.mxu0 0
    %352 = vmatpush1.bf16.msra.mxu0 %v331
    %353 = vmatprep.subr.bf16.mxu0 0
    %354 = vmatpush1.bf16.msra.mxu0 %v332
    %355 = vmatprep.subr.bf16.mxu0 0
    %356 = vmatpush1.bf16.msra.mxu0 %v333
    %357 = vmatprep.subr.bf16.mxu0 0
    %358 = vmatpush1.bf16.msra.mxu0 %v334
    %359 = vmatprep.subr.bf16.mxu0 0
    %360 = vmatpush1.bf16.msra.mxu0 0
    %361 = vmatprep.subr.bf16.mxu0 0
    %362 = vmatpush1.bf16.msra.mxu0 0
    %363 = vmatprep.subr.bf16.mxu0 0
    %364 = vmatpush1.bf16.msra.mxu0 0
    %365 = vmatprep.subr.bf16.mxu0 0
    %366 = vmatpush1.bf16.msra.mxu0 0
    %367 = vmatprep.subr.bf16.mxu0 0
    %368 = vmatpush1.bf16.msra.mxu0 0
    %369 = vmatprep.subr.bf16.mxu0 0
    %370 = vmatpush1.bf16.msra.mxu0 0
    %371 = vmatprep.subr.bf16.mxu0 0
    %372 = vmatpush1.bf16.msra.mxu0 0
    %373 = vmatprep.subr.bf16.mxu0 0
    %374 = vmatpush1.bf16.msra.mxu0 0
    %375 = vmatprep.mubr.bf16.mxu0 0
    %376 = vmatmul.mubr.bf16.gmra.mrb[0].mxu0 %v157
    %v377 = vpop.f32.mrb[0].mxu0
    %v378 = vadd.f32 %v293, %v377
    %v379 = vpop.f32.mrb[0].mxu0
    %v380 = vpop.f32.mrb[0].mxu0
    %v381 = vadd.f32 %v293, %v380
    %v382 = vpop.f32.mrb[0].mxu0
    %383 = vdwg.mxu0
    %v384 = vmax.f32 %v378, 0.0
    %v385 = vmax.f32 %v381, 0.0
    %v386 = vpack.c.bf16 %v385, %v384
    %v387 = vld [vmem:[#allocation8] sm:$0xf]
    %v388 = vld [vmem:[#allocation8 + $0x4] sm:$0xf]
    %v389 = vld [vmem:[#allocation8 + $0x8] sm:$0xf]
    %v390 = vld [vmem:[#allocation8 + $0xc] sm:$0xf]
    %v391 = vld [vmem:[#allocation8 + $0x10] sm:$0xf]
    %v392 = vld [vmem:[#allocation8 + $0x14] sm:$0xf]
    %v393 = vld [vmem:[#allocation8 + $0x18] sm:$0xf]
    %v394 = vld [vmem:[#allocation8 + $0x1c] sm:$0xf]
    %v395 = vld [vmem:[#allocation8 + $0x20] sm:$0xf]
    %v396 = vld [vmem:[#allocation8 + $0x24] sm:$0xf]
    %v397 = vld [vmem:[#allocation8 + $0x28] sm:$0xf]
    %v398 = vld [vmem:[#allocation8 + $0x2c] sm:$0xf]
    %v399 = vld [vmem:[#allocation8 + $0x30] sm:$0xf]
    %v400 = vld [vmem:[#allocation8 + $0x34] sm:$0xf]
    %v401 = vld [vmem:[#allocation8 + $0x38] sm:$0xf]
    %v402 = vld [vmem:[#allocation8 + $0x3c] sm:$0xf]
    %v403 = vld [vmem:[%s8] sm:$0x1]
    %v405 = vlaneseq
    %v406 = vshrl.u32 %v405, 7
    %v407 = vsub.s32 0, %v406
    %v408 = vrot.slane %v403, %v407
    %v426 = vunpack.c.l.b16 %v387
    %v427 = vunpack.c.l.b16 %v388
    %v428 = vunpack.c.l.b16 %v389
    %v429 = vunpack.c.l.b16 %v390
    %v430 = vunpack.c.l.b16 %v391
    %v431 = vunpack.c.l.b16 %v392
    %v432 = vunpack.c.l.b16 %v393
    %v433 = vunpack.c.l.b16 %v394
    %v434 = vunpack.c.l.b16 %v395
    %v435 = vunpack.c.l.b16 %v396
    %v436 = vunpack.c.l.b16 %v397
    %v437 = vunpack.c.l.b16 %v398
    %v438 = vunpack.c.l.b16 %v399
    %v439 = vunpack.c.l.b16 %v400
    %v440 = vunpack.c.l.b16 %v401
    %v441 = vunpack.c.l.b16 %v402
    %v442 = vpack.c.b16 %v427, %v426
    %v443 = vpack.c.b16 %v429, %v428
    %v444 = vpack.c.b16 %v431, %v430
    %v445 = vpack.c.b16 %v433, %v432
    %v446 = vpack.c.b16 %v435, %v434
    %v447 = vpack.c.b16 %v437, %v436
    %v448 = vpack.c.b16 %v439, %v438
    %v449 = vpack.c.b16 %v441, %v440
    %458 = vmatprep.subr.bf16.mxu0 0
    %459 = vmatpush1.bf16.msra.mxu0 %v442
    %460 = vmatprep.subr.bf16.mxu0 0
    %461 = vmatpush1.bf16.msra.mxu0 %v443
    %462 = vmatprep.subr.bf16.mxu0 0
    %463 = vmatpush1.bf16.msra.mxu0 %v444
    %464 = vmatprep.subr.bf16.mxu0 0
    %465 = vmatpush1.bf16.msra.mxu0 %v445
    %466 = vmatprep.subr.bf16.mxu0 0
    %467 = vmatpush1.bf16.msra.mxu0 %v446
    %468 = vmatprep.subr.bf16.mxu0 0
    %469 = vmatpush1.bf16.msra.mxu0 %v447
    %470 = vmatprep.subr.bf16.mxu0 0
    %471 = vmatpush1.bf16.msra.mxu0 %v448
    %472 = vmatprep.subr.bf16.mxu0 0
    %473 = vmatpush1.bf16.msra.mxu0 %v449
    %474 = vmatprep.subr.bf16.mxu0 0
    %475 = vmatpush1.bf16.msra.mxu0 0
    %476 = vmatprep.subr.bf16.mxu0 0
    %477 = vmatpush1.bf16.msra.mxu0 0
    %478 = vmatprep.subr.bf16.mxu0 0
    %479 = vmatpush1.bf16.msra.mxu0 0
    %480 = vmatprep.subr.bf16.mxu0 0
    %481 = vmatpush1.bf16.msra.mxu0 0
    %482 = vmatprep.subr.bf16.mxu0 0
    %483 = vmatpush1.bf16.msra.mxu0 0
    %484 = vmatprep.subr.bf16.mxu0 0
    %485 = vmatpush1.bf16.msra.mxu0 0
    %486 = vmatprep.subr.bf16.mxu0 0
    %487 = vmatpush1.bf16.msra.mxu0 0
    %488 = vmatprep.subr.bf16.mxu0 0
    %489 = vmatpush1.bf16.msra.mxu0 0
    %490 = vmatprep.mubr.bf16.mxu0 0
    %491 = vmatmul.mubr.bf16.gmra.mrb[0].mxu0 %v386
    %v492 = vpop.f32.mrb[0].mxu0
    %v493 = vadd.f32 %v408, %v492
    %v494 = vpop.f32.mrb[0].mxu0
    %v495 = vpop.f32.mrb[0].mxu0
    %v496 = vadd.f32 %v408, %v495
    %v497 = vpop.f32.mrb[0].mxu0
    %498 = vdwg.mxu0
    %v499 = vmax.f32 %v493, 0.0
    %v500 = vmax.f32 %v496, 0.0
    %v501 = vpack.c.bf16 %v500, %v499
    %v502 = vld [vmem:[#allocation10] sm:$0xf]
    %v503 = vld [vmem:[#allocation10 + $0x4] sm:$0xf]
    %v504 = vld [vmem:[#allocation10 + $0x8] sm:$0xf]
    %v505 = vld [vmem:[#allocation10 + $0xc] sm:$0xf]
    %v506 = vld [vmem:[#allocation10 + $0x10] sm:$0xf]
    %v507 = vld [vmem:[#allocation10 + $0x14] sm:$0xf]
    %v508 = vld [vmem:[#allocation10 + $0x18] sm:$0xf]
    %v509 = vld [vmem:[#allocation10 + $0x1c] sm:$0xf]
    %v510 = vld [vmem:[#allocation10 + $0x20] sm:$0xf]
    %v511 = vld [vmem:[#allocation10 + $0x24] sm:$0xf]
    %v512 = vld [vmem:[#allocation10 + $0x28] sm:$0xf]
    %v513 = vld [vmem:[#allocation10 + $0x2c] sm:$0xf]
    %v514 = vld [vmem:[#allocation10 + $0x30] sm:$0xf]
    %v515 = vld [vmem:[#allocation10 + $0x34] sm:$0xf]
    %v516 = vld [vmem:[#allocation10 + $0x38] sm:$0xf]
    %v517 = vld [vmem:[#allocation10 + $0x3c] sm:$0xf]
    %v518 = vld [vmem:[%s10] sm:$0x1]
    %v520 = vlaneseq
    %v521 = vshrl.u32 %v520, 7
    %v522 = vsub.s32 0, %v521
    %v523 = vrot.slane %v518, %v522
    %v541 = vunpack.c.l.b16 %v502
    %v542 = vunpack.c.l.b16 %v503
    %v543 = vunpack.c.l.b16 %v504
    %v544 = vunpack.c.l.b16 %v505
    %v545 = vunpack.c.l.b16 %v506
    %v546 = vunpack.c.l.b16 %v507
    %v547 = vunpack.c.l.b16 %v508
    %v548 = vunpack.c.l.b16 %v509
    %v549 = vunpack.c.l.b16 %v510
    %v550 = vunpack.c.l.b16 %v511
    %v551 = vunpack.c.l.b16 %v512
    %v552 = vunpack.c.l.b16 %v513
    %v553 = vunpack.c.l.b16 %v514
    %v554 = vunpack.c.l.b16 %v515
    %v555 = vunpack.c.l.b16 %v516
    %v556 = vunpack.c.l.b16 %v517
    %v557 = vpack.c.b16 %v542, %v541
    %v558 = vpack.c.b16 %v544, %v543
    %v559 = vpack.c.b16 %v546, %v545
    %v560 = vpack.c.b16 %v548, %v547
    %v561 = vpack.c.b16 %v550, %v549
    %v562 = vpack.c.b16 %v552, %v551
    %v563 = vpack.c.b16 %v554, %v553
    %v564 = vpack.c.b16 %v556, %v555
    %573 = vmatprep.subr.bf16.mxu0 0
    %574 = vmatpush1.bf16.msra.mxu0 %v557
    %575 = vmatprep.subr.bf16.mxu0 0
    %576 = vmatpush1.bf16.msra.mxu0 %v558
    %577 = vmatprep.subr.bf16.mxu0 0
    %578 = vmatpush1.bf16.msra.mxu0 %v559
    %579 = vmatprep.subr.bf16.mxu0 0
    %580 = vmatpush1.bf16.msra.mxu0 %v560
    %581 = vmatprep.subr.bf16.mxu0 0
    %582 = vmatpush1.bf16.msra.mxu0 %v561
    %583 = vmatprep.subr.bf16.mxu0 0
    %584 = vmatpush1.bf16.msra.mxu0 %v562
    %585 = vmatprep.subr.bf16.mxu0 0
    %586 = vmatpush1.bf16.msra.mxu0 %v563
    %587 = vmatprep.subr.bf16.mxu0 0
    %588 = vmatpush1.bf16.msra.mxu0 %v564
    %589 = vmatprep.subr.bf16.mxu0 0
    %590 = vmatpush1.bf16.msra.mxu0 0
    %591 = vmatprep.subr.bf16.mxu0 0
    %592 = vmatpush1.bf16.msra.mxu0 0
    %593 = vmatprep.subr.bf16.mxu0 0
    %594 = vmatpush1.bf16.msra.mxu0 0
    %595 = vmatprep.subr.bf16.mxu0 0
    %596 = vmatpush1.bf16.msra.mxu0 0
    %597 = vmatprep.subr.bf16.mxu0 0
    %598 = vmatpush1.bf16.msra.mxu0 0
    %599 = vmatprep.subr.bf16.mxu0 0
    %600 = vmatpush1.bf16.msra.mxu0 0
    %601 = vmatprep.subr.bf16.mxu0 0
    %602 = vmatpush1.bf16.msra.mxu0 0
    %603 = vmatprep.subr.bf16.mxu0 0
    %604 = vmatpush1.bf16.msra.mxu0 0
    %605 = vmatprep.mubr.bf16.mxu0 0
    %606 = vmatmul.mubr.bf16.gmra.mrb[0].mxu0 %v501
    %v607 = vpop.f32.mrb[0].mxu0
    %v608 = vadd.f32 %v523, %v607
    %v609 = vpop.f32.mrb[0].mxu0
    %v610 = vpop.f32.mrb[0].mxu0
    %v611 = vadd.f32 %v523, %v610
    %v612 = vpop.f32.mrb[0].mxu0
    %613 = vdwg.mxu0
    %614 = vst [vmem:[#allocation12] sm:$0xff] %v608
    %615 = vst [vmem:[#allocation12 + $0x8] sm:$0xff] %v611
    // Predicated region
    $region66: #{tpu_custom_call.1} parent=1 // pred_check
      _
    $region67: #{tpu_custom_call.1} parent=1 // pred_check_branch
      %617 = sbr.rel (0) target = $region69
    $region68: #{tpu_custom_call.1} parent=1 // pred_region
      %s619 = ssub.s32 256, 256
      %620 = vsyncadd [#allocation4], %s619
      %s621 = sshll.u32 [#allocation11], 4
      %s622 = int_to_ptr.vmem [resolvable:$true] %s621
      %627 = dma.vmem_to_hbm [thread:$0]  %s622, 256, %s11, [#allocation4], 128, 128, 8
    $region69: #{tpu_custom_call.1} parent=1 // pred_fallthru
      _
    // Predicated region
    $region70: #{tpu_custom_call.1} parent=1 // pred_check
      _
    $region71: #{tpu_custom_call.1} parent=1 // pred_check_branch
      %629 = sbr.rel (0) target = $region73
    $region72: #{tpu_custom_call.1} parent=1 // pred_region
      %s631 = ssub.s32 256, 256
      %632 = vsyncadd [#allocation13], %s631
      %s633 = sshll.u32 [#allocation12], 4
      %s634 = int_to_ptr.vmem [resolvable:$true] %s633
      %639 = dma.vmem_to_hbm [thread:$0]  %s634, 256, %s12, [#allocation13], 128, 128, 8
    $region73: #{tpu_custom_call.1} parent=1 // pred_fallthru
      _
    // Predicated region
    $region74: #{tpu_custom_call.1} parent=1 // pred_check
      _
    $region75: #{tpu_custom_call.1} parent=1 // pred_check_branch
      %641 = sbr.rel (0) target = $region77
    $region76: #{tpu_custom_call.1} parent=1 // pred_region
      %642 = dma.done [#allocation4], 256
    $region77: #{tpu_custom_call.1} parent=1 // pred_fallthru
      _
    // Predicated region
    $region78: #{tpu_custom_call.1} parent=1 // pred_check
      _
    $region79: #{tpu_custom_call.1} parent=1 // pred_check_branch
      %644 = sbr.rel (0) target = $region81
    $region80: #{tpu_custom_call.1} parent=1 // pred_region
      %645 = dma.done [#allocation13], 256
    $region81: #{tpu_custom_call.1} parent=1 // pred_fallthru
      _
    %646 = vsyncpa [#allocation3], 1
    %647 = vsyncpa [#allocation6], 1
    %648 = vsyncpa [#allocation9], 1
    %649 = vsyncpa [#allocation4], 1
    %650 = vsyncpa [#allocation13], 1

</llo_original>
